<compile_context>
chip_gen: v7x
topology: tpu7x:2x2x1
jax: 0.10.0
libtpu: 0.0.40
codegen_flags: <defaults>
</compile_context>

<pallas_src>
import jax
import jax.numpy as jnp
from jax.experimental import pallas as pl
from jax.experimental.pallas import tpu as pltpu

OUT_PAD = 128  # packed lane-dense output width: cols [0:A) = mean, col A = value


def _lo_policy_value_kernel(
    obs_ref, goal_ref,          # (TB, obs_dim), (TB, goal_dim)   bf16
    wo_ref, wg_ref, be1_ref,    # encoder L1, split over obs/goal: (Do,H),(Dg,H) bf16, (1,H) f32
    we2_ref, be2_ref,           # encoder L2: (H,E) bf16, (1,E) f32
    wh_ref, bh_ref,             # fused actor-hidden|critic-hidden: (E,2H) bf16, (1,2H) f32
    whead_ref, bhead_ref,       # fused packed head: (2H,128) bf16, (1,128) f32
    out_ref,                    # (TB, 128) f32
):
    f32 = jnp.float32
    bf16 = jnp.bfloat16

    # encoder layer 1: h = relu(obs @ Wo + goal @ Wg + b1)   (concat done via split weights)
    h = jnp.dot(obs_ref[...], wo_ref[...], preferred_element_type=f32)
    h = h + jnp.dot(goal_ref[...], wg_ref[...], preferred_element_type=f32)
    h = jnp.maximum(h + be1_ref[...], 0.0)

    # encoder layer 2 -> embedding
    emb = jnp.dot(h.astype(bf16), we2_ref[...], preferred_element_type=f32)
    emb = jnp.maximum(emb + be2_ref[...], 0.0)

    # fused actor-hidden / critic-hidden (one (E, 2H) matmul)
    hh = jnp.dot(emb.astype(bf16), wh_ref[...], preferred_element_type=f32)
    hh = jnp.maximum(hh + bh_ref[...], 0.0)

    # fused, lane-dense packed head: [mean | value | zero padding]
    out = jnp.dot(hh.astype(bf16), whead_ref[...], preferred_element_type=f32)
    out_ref[...] = out + bhead_ref[...]


def lo_policy_value_forward(obs, goal, kparams, action_dim, *, tile_b=512):
    """Fused forward pass. Returns ((mean, std), value)."""
    B = obs.shape[0]
    obs_b = obs.astype(jnp.bfloat16)
    goal_b = goal.astype(jnp.bfloat16)

    # Batch tiling: TILE_B rows per grid step (whole batch if small).
    if B >= tile_b:
        tb = tile_b
        b_pad = pl.cdiv(B, tb) * tb
    else:
        tb = B
        b_pad = B
    if b_pad != B:
        pad = b_pad - B
        obs_b = jnp.pad(obs_b, ((0, pad), (0, 0)))
        goal_b = jnp.pad(goal_b, ((0, pad), (0, 0)))
    grid = (b_pad // tb,)

    def batch_spec(feat):
        return pl.BlockSpec((tb, feat), lambda i: (i, 0))

    def resident_spec(shape):
        # Same block index every grid step -> weight stays resident in VMEM.
        return pl.BlockSpec(shape, lambda i: (0, 0))

    weights = [
        kparams["wo"], kparams["wg"], kparams["be1"],
        kparams["we2"], kparams["be2"],
        kparams["wh"], kparams["bh"],
        kparams["whead"], kparams["bhead"],
    ]
    in_specs = [batch_spec(obs_b.shape[1]), batch_spec(goal_b.shape[1])]
    in_specs += [resident_spec(w.shape) for w in weights]

    packed = pl.pallas_call(
        _lo_policy_value_kernel,
        grid=grid,
        in_specs=in_specs,
        out_specs=pl.BlockSpec((tb, OUT_PAD), lambda i: (i, 0)),
        out_shape=jax.ShapeDtypeStruct((b_pad, OUT_PAD), jnp.float32),
        compiler_params=pltpu.CompilerParams(dimension_semantics=("parallel",)),
    )(obs_b, goal_b, *weights)

    mean = packed[:B, :action_dim]
    value = packed[:B, action_dim]
    # std is batch-independent -> computed outside the kernel.
    std = jnp.broadcast_to(jnp.exp(kparams["log_std"]), mean.shape)
    return (mean, std), value


# ----------------------------------------------------------------------------
# Parameter construction (torch init_params semantics) + kernel-layout packing.
# ----------------------------------------------------------------------------
def _linear_params(key, in_dim, out_dim):
    """torch init_params: weight ~ N(0,1) row-normalized over input dim; bias 0.

    torch nn.Linear weight is (out, in); we replicate the init and store the
    transpose (in, out) for the kernel's x @ W convention.
    """
    w = jax.random.normal(key, (out_dim, in_dim), dtype=jnp.float32)
    w = w / jnp.sqrt(jnp.sum(w * w, axis=1, keepdims=True))
    b = jnp.zeros((1, out_dim), dtype=jnp.float32)
    return jnp.transpose(w), b


def make_params(key, obs_dim, goal_dim, h_dim, action_dim):
    """Reference (f32, unfused) parameters matching the torch module layout."""
    din = obs_dim + goal_dim
    emb = h_dim  # env_model.size()
    keys = jax.random.split(key, 6)
    we1, be1 = _linear_params(keys[0], din, h_dim)
    we2, be2 = _linear_params(keys[1], h_dim, emb)
    wa1, ba1 = _linear_params(keys[2], emb, h_dim)
    wa2, ba2 = _linear_params(keys[3], h_dim, action_dim)
    wc1, bc1 = _linear_params(keys[4], emb, h_dim)
    wc2, bc2 = _linear_params(keys[5], h_dim, 1)
    log_std = jnp.zeros((1, action_dim), dtype=jnp.float32)
    return dict(
        we1=we1, be1=be1, we2=we2, be2=be2,
        wa1=wa1, ba1=ba1, wa2=wa2, ba2=ba2, log_std=log_std,
        wc1=wc1, bc1=bc1, wc2=wc2, bc2=bc2,
    )


def pack_params(params, obs_dim, h_dim, action_dim):
    """Build the fused / padded / bf16 kernel layout from reference params."""
    bf16 = jnp.bfloat16
    # Split encoder L1 over the (obs, goal) inputs so no concat is needed.
    wo = params["we1"][:obs_dim].astype(bf16)
    wg = params["we1"][obs_dim:].astype(bf16)
    # Fuse actor-hidden and critic-hidden -> single (E, 2H) matmul.
    wh = jnp.concatenate([params["wa1"], params["wc1"]], axis=1).astype(bf16)
    bh = jnp.concatenate([params["ba1"], params["bc1"]], axis=1)
    # Block-diagonal packed head: rows [0:H) x cols [0:A) = actor mean,
    # rows [H:2H) x col A = critic value; padded to 128 lanes (lane-dense out).
    h, a = h_dim, action_dim
    whead = jnp.zeros((2 * h, OUT_PAD), jnp.float32)
    whead = whead.at[:h, :a].set(params["wa2"])
    whead = whead.at[h:, a:a + 1].set(params["wc2"])
    bhead = jnp.zeros((1, OUT_PAD), jnp.float32)
    bhead = bhead.at[:, :a].set(params["ba2"])
    bhead = bhead.at[:, a:a + 1].set(params["bc2"])
    return dict(
        wo=wo, wg=wg, be1=params["be1"],
        we2=params["we2"].astype(bf16), be2=params["be2"],
        wh=wh, bh=bh,
        whead=whead.astype(bf16), bhead=bhead,
        log_std=params["log_std"],
    )


if __name__ == "__main__":
    B, OBS_DIM, GOAL_DIM, H_DIM, ACTION_DIM = 2, 16, 4, 32, 6

    root = jax.random.PRNGKey(0)
    k_obs, k_goal, k_params = jax.random.split(root, 3)

    obs = jax.random.normal(k_obs, (B, OBS_DIM), dtype=jnp.float32)
    goal = jax.random.normal(k_goal, (B, GOAL_DIM), dtype=jnp.float32)
    params = make_params(k_params, OBS_DIM, GOAL_DIM, H_DIM, ACTION_DIM)
    kparams = pack_params(params, OBS_DIM, H_DIM, ACTION_DIM)

    (mean, std), value = lo_policy_value_forward(obs, goal, kparams, ACTION_DIM)
    jax.block_until_ready((mean, std, value))

    assert mean.shape == (B, ACTION_DIM)
    assert std.shape == (B, ACTION_DIM)
    assert value.shape == (B,)

    # --- exact-mirror reference (same bf16 inputs / f32 accumulation) ---
    bf16 = jnp.bfloat16
    f32 = jnp.float32
    ob, gb = obs.astype(bf16), goal.astype(bf16)
    h = (jnp.dot(ob, kparams["wo"], preferred_element_type=f32)
         + jnp.dot(gb, kparams["wg"], preferred_element_type=f32))
    h = jax.nn.relu(h + kparams["be1"])
    emb = jax.nn.relu(
        jnp.dot(h.astype(bf16), kparams["we2"], preferred_element_type=f32)
        + kparams["be2"])
    hh = jax.nn.relu(
        jnp.dot(emb.astype(bf16), kparams["wh"], preferred_element_type=f32)
        + kparams["bh"])
    packed_ref = (jnp.dot(hh.astype(bf16), kparams["whead"],
                          preferred_element_type=f32) + kparams["bhead"])
    assert jnp.allclose(mean, packed_ref[:, :ACTION_DIM], atol=1e-4)
    assert jnp.allclose(value, packed_ref[:, ACTION_DIM], atol=1e-4)

    # --- loose semantic check against the original (f32, unfused) math ---
    x = jnp.concatenate([obs, goal], axis=1)
    h32 = jax.nn.relu(x @ params["we1"] + params["be1"])
    emb32 = jax.nn.relu(h32 @ params["we2"] + params["be2"])
    a32 = jax.nn.relu(emb32 @ params["wa1"] + params["ba1"])
    mean32 = a32 @ params["wa2"] + params["ba2"]
    c32 = jax.nn.relu(emb32 @ params["wc1"] + params["bc1"])
    value32 = (c32 @ params["wc2"] + params["bc2"]).squeeze(1)
    assert jnp.allclose(mean, mean32, atol=5e-2)
    assert jnp.allclose(value, value32, atol=5e-2)
    assert jnp.allclose(std, jnp.exp(jnp.broadcast_to(params["log_std"],
                                                      (B, ACTION_DIM))))

    print("KERNEL_OK")
</pallas_src>

<mosaic_0001>
module attributes {stable_mosaic.version = 11 : i64} {
  func.func @_lo_policy_value_kernel(%arg0: i32, %arg1: memref<2x16xbf16, #tpu.memory_space<vmem>>, %arg2: memref<2x4xbf16, #tpu.memory_space<vmem>>, %arg3: memref<16x32xbf16, #tpu.memory_space<vmem>>, %arg4: memref<4x32xbf16, #tpu.memory_space<vmem>>, %arg5: memref<1x32xf32, #tpu.memory_space<vmem>>, %arg6: memref<32x32xbf16, #tpu.memory_space<vmem>>, %arg7: memref<1x32xf32, #tpu.memory_space<vmem>>, %arg8: memref<32x64xbf16, #tpu.memory_space<vmem>>, %arg9: memref<1x64xf32, #tpu.memory_space<vmem>>, %arg10: memref<64x128xbf16, #tpu.memory_space<vmem>>, %arg11: memref<1x128xf32, #tpu.memory_space<vmem>>, %arg12: memref<2x128xf32, #tpu.memory_space<vmem>>) attributes {dimension_semantics = [#tpu.dimension_semantics<parallel>], iteration_bounds = array<i64: 1>, scalar_prefetch = 0 : i64, scratch_operands = 0 : i64, tpu.core_type = #tpu.core_type<tc>, window_params = [{transform_indices = @transform_0, window_bounds = array<i64: 2, 16>}, {transform_indices = @transform_1, window_bounds = array<i64: 2, 4>}, {pipeline_mode = #tpu.pipeline_mode<synchronous>, transform_indices = @transform_2, window_bounds = array<i64: 16, 32>}, {pipeline_mode = #tpu.pipeline_mode<synchronous>, transform_indices = @transform_3, window_bounds = array<i64: 4, 32>}, {pipeline_mode = #tpu.pipeline_mode<synchronous>, transform_indices = @transform_4, window_bounds = array<i64: 1, 32>}, {pipeline_mode = #tpu.pipeline_mode<synchronous>, transform_indices = @transform_5, window_bounds = array<i64: 32, 32>}, {pipeline_mode = #tpu.pipeline_mode<synchronous>, transform_indices = @transform_6, window_bounds = array<i64: 1, 32>}, {pipeline_mode = #tpu.pipeline_mode<synchronous>, transform_indices = @transform_7, window_bounds = array<i64: 32, 64>}, {pipeline_mode = #tpu.pipeline_mode<synchronous>, transform_indices = @transform_8, window_bounds = array<i64: 1, 64>}, {pipeline_mode = #tpu.pipeline_mode<synchronous>, transform_indices = @transform_9, window_bounds = array<i64: 64, 128>}, {pipeline_mode = #tpu.pipeline_mode<synchronous>, transform_indices = @transform_10, window_bounds = array<i64: 1, 128>}, {transform_indices = @transform_11, window_bounds = array<i64: 2, 128>}]} {
    %c0 = arith.constant 0 : index
    %c0_0 = arith.constant 0 : index
    %0 = vector.load %arg1[%c0, %c0_0] : memref<2x16xbf16, #tpu.memory_space<vmem>>, vector<2x16xbf16>
    %c0_1 = arith.constant 0 : index
    %c0_2 = arith.constant 0 : index
    %1 = vector.load %arg3[%c0_1, %c0_2] : memref<16x32xbf16, #tpu.memory_space<vmem>>, vector<16x32xbf16>
    %cst = arith.constant dense<0.000000e+00> : vector<2x32xf32>
    %2 = tpu.matmul %0, %1, %cst {dimension_numbers = #tpu.dot_dimension_numbers<[1], [0], [0], [1], [0, 0, 1, 1], [], []>} : vector<2x16xbf16>, vector<16x32xbf16>, vector<2x32xf32> -> vector<2x32xf32>
    %c0_3 = arith.constant 0 : index
    %c0_4 = arith.constant 0 : index
    %3 = vector.load %arg2[%c0_3, %c0_4] : memref<2x4xbf16, #tpu.memory_space<vmem>>, vector<2x4xbf16>
    %c0_5 = arith.constant 0 : index
    %c0_6 = arith.constant 0 : index
    %4 = vector.load %arg4[%c0_5, %c0_6] : memref<4x32xbf16, #tpu.memory_space<vmem>>, vector<4x32xbf16>
    %cst_7 = arith.constant dense<0.000000e+00> : vector<2x32xf32>
    %5 = tpu.matmul %3, %4, %cst_7 {dimension_numbers = #tpu.dot_dimension_numbers<[1], [0], [0], [1], [0, 0, 1, 1], [], []>} : vector<2x4xbf16>, vector<4x32xbf16>, vector<2x32xf32> -> vector<2x32xf32>
    %6 = arith.addf %2, %5 : vector<2x32xf32>
    %c0_8 = arith.constant 0 : index
    %c0_9 = arith.constant 0 : index
    %7 = vector.load %arg5[%c0_8, %c0_9] : memref<1x32xf32, #tpu.memory_space<vmem>>, vector<1x32xf32>
    %8 = vector.broadcast %7 : vector<1x32xf32> to vector<2x32xf32>
    %9 = arith.addf %6, %8 : vector<2x32xf32>
    %cst_10 = arith.constant 0.000000e+00 : f32
    %10 = vector.broadcast %cst_10 : f32 to vector<2x32xf32>
    %11 = arith.maximumf %9, %10 : vector<2x32xf32>
    %12 = arith.truncf %11 : vector<2x32xf32> to vector<2x32xbf16>
    %c0_11 = arith.constant 0 : index
    %c0_12 = arith.constant 0 : index
    %13 = vector.load %arg6[%c0_11, %c0_12] : memref<32x32xbf16, #tpu.memory_space<vmem>>, vector<32x32xbf16>
    %cst_13 = arith.constant dense<0.000000e+00> : vector<2x32xf32>
    %14 = tpu.matmul %12, %13, %cst_13 {dimension_numbers = #tpu.dot_dimension_numbers<[1], [0], [0], [1], [0, 0, 1, 1], [], []>} : vector<2x32xbf16>, vector<32x32xbf16>, vector<2x32xf32> -> vector<2x32xf32>
    %c0_14 = arith.constant 0 : index
    %c0_15 = arith.constant 0 : index
    %15 = vector.load %arg7[%c0_14, %c0_15] : memref<1x32xf32, #tpu.memory_space<vmem>>, vector<1x32xf32>
    %16 = vector.broadcast %15 : vector<1x32xf32> to vector<2x32xf32>
    %17 = arith.addf %14, %16 : vector<2x32xf32>
    %cst_16 = arith.constant 0.000000e+00 : f32
    %18 = vector.broadcast %cst_16 : f32 to vector<2x32xf32>
    %19 = arith.maximumf %17, %18 : vector<2x32xf32>
    %20 = arith.truncf %19 : vector<2x32xf32> to vector<2x32xbf16>
    %c0_17 = arith.constant 0 : index
    %c0_18 = arith.constant 0 : index
    %21 = vector.load %arg8[%c0_17, %c0_18] : memref<32x64xbf16, #tpu.memory_space<vmem>>, vector<32x64xbf16>
    %cst_19 = arith.constant dense<0.000000e+00> : vector<2x64xf32>
    %22 = tpu.matmul %20, %21, %cst_19 {dimension_numbers = #tpu.dot_dimension_numbers<[1], [0], [0], [1], [0, 0, 1, 1], [], []>} : vector<2x32xbf16>, vector<32x64xbf16>, vector<2x64xf32> -> vector<2x64xf32>
    %c0_20 = arith.constant 0 : index
    %c0_21 = arith.constant 0 : index
    %23 = vector.load %arg9[%c0_20, %c0_21] : memref<1x64xf32, #tpu.memory_space<vmem>>, vector<1x64xf32>
    %24 = vector.broadcast %23 : vector<1x64xf32> to vector<2x64xf32>
    %25 = arith.addf %22, %24 : vector<2x64xf32>
    %cst_22 = arith.constant 0.000000e+00 : f32
    %26 = vector.broadcast %cst_22 : f32 to vector<2x64xf32>
    %27 = arith.maximumf %25, %26 : vector<2x64xf32>
    %28 = arith.truncf %27 : vector<2x64xf32> to vector<2x64xbf16>
    %c0_23 = arith.constant 0 : index
    %c0_24 = arith.constant 0 : index
    %29 = vector.load %arg10[%c0_23, %c0_24] : memref<64x128xbf16, #tpu.memory_space<vmem>>, vector<64x128xbf16>
    %cst_25 = arith.constant dense<0.000000e+00> : vector<2x128xf32>
    %30 = tpu.matmul %28, %29, %cst_25 {dimension_numbers = #tpu.dot_dimension_numbers<[1], [0], [0], [1], [0, 0, 1, 1], [], []>} : vector<2x64xbf16>, vector<64x128xbf16>, vector<2x128xf32> -> vector<2x128xf32>
    %c0_26 = arith.constant 0 : index
    %c0_27 = arith.constant 0 : index
    %31 = vector.load %arg11[%c0_26, %c0_27] : memref<1x128xf32, #tpu.memory_space<vmem>>, vector<1x128xf32>
    %32 = vector.broadcast %31 : vector<1x128xf32> to vector<2x128xf32>
    %33 = arith.addf %30, %32 : vector<2x128xf32>
    %c0_28 = arith.constant 0 : index
    %c0_29 = arith.constant 0 : index
    %34 = vector.load %arg12[%c0_28, %c0_29] : memref<2x128xf32, #tpu.memory_space<vmem>>, vector<2x128xf32>
    tpu.vector_store %arg12[%c0_28, %c0_29], %33 {strides = array<i32>} : memref<2x128xf32, #tpu.memory_space<vmem>>, vector<2x128xf32>,
    return
  }
  func.func @transform_0(%arg0: i32) -> (i32, i32) {
    %c0_i32 = arith.constant 0 : i32
    %c0_i32_0 = arith.constant 0 : i32
    return %arg0, %c0_i32 : i32, i32
  }
  func.func @transform_1(%arg0: i32) -> (i32, i32) {
    %c0_i32 = arith.constant 0 : i32
    %c0_i32_0 = arith.constant 0 : i32
    return %arg0, %c0_i32 : i32, i32
  }
  func.func @transform_2(%arg0: i32) -> (i32, i32) {
    %c0_i32 = arith.constant 0 : i32
    %c0_i32_0 = arith.constant 0 : i32
    %c0_i32_1 = arith.constant 0 : i32
    return %c0_i32, %c0_i32_0 : i32, i32
  }
  func.func @transform_3(%arg0: i32) -> (i32, i32) {
    %c0_i32 = arith.constant 0 : i32
    %c0_i32_0 = arith.constant 0 : i32
    %c0_i32_1 = arith.constant 0 : i32
    return %c0_i32, %c0_i32_0 : i32, i32
  }
  func.func @transform_4(%arg0: i32) -> (i32, i32) {
    %c0_i32 = arith.constant 0 : i32
    %c0_i32_0 = arith.constant 0 : i32
    %c0_i32_1 = arith.constant 0 : i32
    return %c0_i32, %c0_i32_0 : i32, i32
  }
  func.func @transform_5(%arg0: i32) -> (i32, i32) {
    %c0_i32 = arith.constant 0 : i32
    %c0_i32_0 = arith.constant 0 : i32
    %c0_i32_1 = arith.constant 0 : i32
    return %c0_i32, %c0_i32_0 : i32, i32
  }
  func.func @transform_6(%arg0: i32) -> (i32, i32) {
    %c0_i32 = arith.constant 0 : i32
    %c0_i32_0 = arith.constant 0 : i32
    %c0_i32_1 = arith.constant 0 : i32
    return %c0_i32, %c0_i32_0 : i32, i32
  }
  func.func @transform_7(%arg0: i32) -> (i32, i32) {
    %c0_i32 = arith.constant 0 : i32
    %c0_i32_0 = arith.constant 0 : i32
    %c0_i32_1 = arith.constant 0 : i32
    return %c0_i32, %c0_i32_0 : i32, i32
  }
  func.func @transform_8(%arg0: i32) -> (i32, i32) {
    %c0_i32 = arith.constant 0 : i32
    %c0_i32_0 = arith.constant 0 : i32
    %c0_i32_1 = arith.constant 0 : i32
    return %c0_i32, %c0_i32_0 : i32, i32
  }
  func.func @transform_9(%arg0: i32) -> (i32, i32) {
    %c0_i32 = arith.constant 0 : i32
    %c0_i32_0 = arith.constant 0 : i32
    %c0_i32_1 = arith.constant 0 : i32
    return %c0_i32, %c0_i32_0 : i32, i32
  }
  func.func @transform_10(%arg0: i32) -> (i32, i32) {
    %c0_i32 = arith.constant 0 : i32
    %c0_i32_0 = arith.constant 0 : i32
    %c0_i32_1 = arith.constant 0 : i32
    return %c0_i32, %c0_i32_0 : i32, i32
  }
  func.func @transform_11(%arg0: i32) -> (i32, i32) {
    %c0_i32 = arith.constant 0 : i32
    %c0_i32_0 = arith.constant 0 : i32
    return %arg0, %c0_i32 : i32, i32
  }
}

</mosaic_0001>

<llo_original>
// kernel: tpu_custom_call.1
$region0: #{tpu_custom_call.1}
  #allocation0 [shape = 'u32[]', space=smem, size = 0x4, offset = 0x4, fixed_abs, tag = 'smem constant byte address 0x4 - core index']
  #allocation1 [shape = 'u32[144,128]{1,0:T(1,128)}', space=vmem, size = 0x12000, scoped, tag = 'internal scratch']
  %s0 = inlined_call_operand.hbm [shape: bf16[2,16], index: 0, kind: input, shape index: {}]
  %s1 = inlined_call_operand.hbm [shape: bf16[2,4], index: 1, kind: input, shape index: {}]
  %s2 = inlined_call_operand.hbm [shape: bf16[16,32], index: 2, kind: input, shape index: {}]
  %s3 = inlined_call_operand.vmem [shape: bf16[4,32], index: 3, kind: input, shape index: {}]
  %s4 = inlined_call_operand.hbm [shape: f32[1,32], index: 4, kind: input, shape index: {}]
  %s5 = inlined_call_operand.hbm [shape: bf16[32,32], index: 5, kind: input, shape index: {}]
  %s6 = inlined_call_operand.hbm [shape: f32[1,32], index: 6, kind: input, shape index: {}]
  %s7 = inlined_call_operand.hbm [shape: bf16[32,64], index: 7, kind: input, shape index: {}]
  %s8 = inlined_call_operand.hbm [shape: f32[1,64], index: 8, kind: input, shape index: {}]
  %s9 = inlined_call_operand.vmem [shape: bf16[64,128], index: 9, kind: input, shape index: {}]
  %s10 = inlined_call_operand.vmem [shape: f32[1,128], index: 10, kind: input, shape index: {}]
  %s11 = inlined_call_operand.hbm [shape: f32[2,128], index: 11, kind: output, shape index: {}]
  %s12 = sld [smem:[#allocation0]]
  $region86: #{tpu_custom_call.1} parent=0
    _
  %s14 = ssub.s32 1, %s12
  %s15 = scalar_select 0, %s14, %s12
  $region1: #{tpu_custom_call.1} parent=0
    #allocation2 [shape = 'u8[512]{0}', space=vmem, size = 0x400, scoped, tag = 'input window, operand 0, single buffered']
    #allocation3 [shape = 's32[1]{0}', space=sflag, size = 0x4, scoped, tag = 'scoped memory for tpu_custom_call.1']
    #allocation4 [shape = 's32[1]{0}', space=sflag, size = 0x4, scoped, tag = 'scoped memory for tpu_custom_call.1']
    #allocation5 [shape = 'u8[512]{0}', space=vmem, size = 0x400, scoped, tag = 'input window, operand 1, single buffered']
    #allocation6 [shape = 's32[1]{0}', space=sflag, size = 0x4, scoped, tag = 'scoped memory for tpu_custom_call.1']
    #allocation7 [shape = 'u8[4096]{0}', space=vmem, size = 0x1000, scoped, tag = 'input window, operand 2, single buffered']
    #allocation8 [shape = 'u8[512]{0}', space=vmem, size = 0x400, scoped, tag = 'input window, operand 4, single buffered']
    #allocation9 [shape = 's32[1]{0}', space=sflag, size = 0x4, scoped, tag = 'scoped memory for tpu_custom_call.1']
    #allocation10 [shape = 'u8[8192]{0}', space=vmem, size = 0x2000, scoped, tag = 'input window, operand 5, single buffered']
    #allocation11 [shape = 'u8[512]{0}', space=vmem, size = 0x400, scoped, tag = 'input window, operand 6, single buffered']
    #allocation12 [shape = 's32[1]{0}', space=sflag, size = 0x4, scoped, tag = 'scoped memory for tpu_custom_call.1']
    #allocation13 [shape = 'u8[8192]{0}', space=vmem, size = 0x2000, scoped, tag = 'input window, operand 7, single buffered']
    #allocation14 [shape = 'u8[512]{0}', space=vmem, size = 0x400, scoped, tag = 'input window, operand 8, single buffered']
    #allocation15 [shape = 's32[1]{0}', space=sflag, size = 0x4, scoped, tag = 'scoped memory for tpu_custom_call.1']
    #allocation16 [shape = 'u8[1024]{0}', space=vmem, size = 0x400, scoped, tag = 'output window, operand 0, single buffered']
    %16 = vsyncpa [#allocation3], 0
    %17 = vsyncpa [#allocation6], 0
    %18 = vsyncpa [#allocation9], 0
    %19 = vsyncpa [#allocation12], 0
    %20 = vsyncpa [#allocation15], 0
    %21 = vsyncpa [#allocation4], 0
    // Predicated region
    $region2: #{tpu_custom_call.1} parent=1 // pred_check
      _
    $region3: #{tpu_custom_call.1} parent=1 // pred_check_branch
      %23 = sbr.rel (0) target = $region5
    $region4: #{tpu_custom_call.1} parent=1 // pred_region
      %s25 = ssub.s32 16, 16
      %26 = vsyncadd [#allocation3], %s25
      %s28 = sshll.u32 [#allocation2], 4
      %s29 = int_to_ptr.vmem [resolvable:$true] %s28
      %31 = dma.hbm_to_vmem [thread:$0]  %s0, 16, %s29, [#allocation3]
    $region5: #{tpu_custom_call.1} parent=1 // pred_fallthru
      _
    // Predicated region
    $region6: #{tpu_custom_call.1} parent=1 // pred_check
      _
    $region7: #{tpu_custom_call.1} parent=1 // pred_check_branch
      %33 = sbr.rel (0) target = $region9
    $region8: #{tpu_custom_call.1} parent=1 // pred_region
      %s35 = ssub.s32 16, 16
      %36 = vsyncadd [#allocation6], %s35
      %s38 = sshll.u32 [#allocation5], 4
      %s39 = int_to_ptr.vmem [resolvable:$true] %s38
      %41 = dma.hbm_to_vmem [thread:$0]  %s1, 16, %s39, [#allocation6]
    $region9: #{tpu_custom_call.1} parent=1 // pred_fallthru
      _
    // Predicated region
    $region10: #{tpu_custom_call.1} parent=1 // pred_check
      _
    $region11: #{tpu_custom_call.1} parent=1 // pred_check_branch
      %43 = sbr.rel (0) target = $region13
    $region12: #{tpu_custom_call.1} parent=1 // pred_region
      %s45 = ssub.s32 128, 128
      %46 = vsyncadd [#allocation6], %s45
      %s47 = sshll.u32 [#allocation7], 4
      %s48 = int_to_ptr.vmem [resolvable:$true] %s47
      %53 = dma.hbm_to_vmem [thread:$0]  %s2, 128, %s48, [#allocation6], 64, 64, 4
    $region13: #{tpu_custom_call.1} parent=1 // pred_fallthru
      _
    // Predicated region
    $region14: #{tpu_custom_call.1} parent=1 // pred_check
      _
    $region15: #{tpu_custom_call.1} parent=1 // pred_check_branch
      %55 = sbr.rel (0) target = $region17
    $region16: #{tpu_custom_call.1} parent=1 // pred_region
      _
    $region17: #{tpu_custom_call.1} parent=1 // pred_fallthru
      _
    // Predicated region
    $region18: #{tpu_custom_call.1} parent=1 // pred_check
      _
    $region19: #{tpu_custom_call.1} parent=1 // pred_check_branch
      %57 = sbr.rel (0) target = $region21
    $region20: #{tpu_custom_call.1} parent=1 // pred_region
      %s59 = ssub.s32 16, 16
      %60 = vsyncadd [#allocation9], %s59
      %s62 = sshll.u32 [#allocation8], 4
      %s63 = int_to_ptr.vmem [resolvable:$true] %s62
      %65 = dma.hbm_to_vmem [thread:$0]  %s4, 16, %s63, [#allocation9]
    $region21: #{tpu_custom_call.1} parent=1 // pred_fallthru
      _
    // Predicated region
    $region22: #{tpu_custom_call.1} parent=1 // pred_check
      _
    $region23: #{tpu_custom_call.1} parent=1 // pred_check_branch
      %67 = sbr.rel (0) target = $region25
    $region24: #{tpu_custom_call.1} parent=1 // pred_region
      %s69 = ssub.s32 256, 256
      %70 = vsyncadd [#allocation9], %s69
      %s71 = sshll.u32 [#allocation10], 4
      %s72 = int_to_ptr.vmem [resolvable:$true] %s71
      %77 = dma.hbm_to_vmem [thread:$0]  %s5, 256, %s72, [#allocation9], 64, 64, 4
    $region25: #{tpu_custom_call.1} parent=1 // pred_fallthru
      _
    // Predicated region
    $region26: #{tpu_custom_call.1} parent=1 // pred_check
      _
    $region27: #{tpu_custom_call.1} parent=1 // pred_check_branch
      %79 = sbr.rel (0) target = $region29
    $region28: #{tpu_custom_call.1} parent=1 // pred_region
      %s81 = ssub.s32 16, 16
      %82 = vsyncadd [#allocation12], %s81
      %s84 = sshll.u32 [#allocation11], 4
      %s85 = int_to_ptr.vmem [resolvable:$true] %s84
      %87 = dma.hbm_to_vmem [thread:$0]  %s6, 16, %s85, [#allocation12]
    $region29: #{tpu_custom_call.1} parent=1 // pred_fallthru
      _
    // Predicated region
    $region30: #{tpu_custom_call.1} parent=1 // pred_check
      _
    $region31: #{tpu_custom_call.1} parent=1 // pred_check_branch
      %89 = sbr.rel (0) target = $region33
    $region32: #{tpu_custom_call.1} parent=1 // pred_region
      %s91 = ssub.s32 256, 256
      %92 = vsyncadd [#allocation12], %s91
      %s93 = sshll.u32 [#allocation13], 4
      %s94 = int_to_ptr.vmem [resolvable:$true] %s93
      %99 = dma.hbm_to_vmem [thread:$0]  %s7, 256, %s94, [#allocation12], 64, 64, 4
    $region33: #{tpu_custom_call.1} parent=1 // pred_fallthru
      _
    // Predicated region
    $region34: #{tpu_custom_call.1} parent=1 // pred_check
      _
    $region35: #{tpu_custom_call.1} parent=1 // pred_check_branch
      %101 = sbr.rel (0) target = $region37
    $region36: #{tpu_custom_call.1} parent=1 // pred_region
      %s103 = ssub.s32 16, 16
      %104 = vsyncadd [#allocation15], %s103
      %s106 = sshll.u32 [#allocation14], 4
      %s107 = int_to_ptr.vmem [resolvable:$true] %s106
      %109 = dma.hbm_to_vmem [thread:$0]  %s8, 16, %s107, [#allocation15]
    $region37: #{tpu_custom_call.1} parent=1 // pred_fallthru
      _
    // Predicated region
    $region38: #{tpu_custom_call.1} parent=1 // pred_check
      _
    $region39: #{tpu_custom_call.1} parent=1 // pred_check_branch
      %111 = sbr.rel (0) target = $region41
    $region40: #{tpu_custom_call.1} parent=1 // pred_region
      _
    $region41: #{tpu_custom_call.1} parent=1 // pred_fallthru
      _
    // Predicated region
    $region42: #{tpu_custom_call.1} parent=1 // pred_check
      _
    $region43: #{tpu_custom_call.1} parent=1 // pred_check_branch
      %113 = sbr.rel (0) target = $region45
    $region44: #{tpu_custom_call.1} parent=1 // pred_region
      _
    $region45: #{tpu_custom_call.1} parent=1 // pred_fallthru
      _
    // Predicated region
    $region46: #{tpu_custom_call.1} parent=1 // pred_check
      _
    $region47: #{tpu_custom_call.1} parent=1 // pred_check_branch
      %115 = sbr.rel (0) target = $region49
    $region48: #{tpu_custom_call.1} parent=1 // pred_region
      %116 = dma.done [#allocation3], 16
    $region49: #{tpu_custom_call.1} parent=1 // pred_fallthru
      _
    // Predicated region
    $region50: #{tpu_custom_call.1} parent=1 // pred_check
      _
    $region51: #{tpu_custom_call.1} parent=1 // pred_check_branch
      %118 = sbr.rel (0) target = $region53
    $region52: #{tpu_custom_call.1} parent=1 // pred_region
      %119 = dma.done [#allocation6], 16
    $region53: #{tpu_custom_call.1} parent=1 // pred_fallthru
      _
    // Predicated region
    $region54: #{tpu_custom_call.1} parent=1 // pred_check
      _
    $region55: #{tpu_custom_call.1} parent=1 // pred_check_branch
      %121 = sbr.rel (0) target = $region57
    $region56: #{tpu_custom_call.1} parent=1 // pred_region
      %122 = dma.done [#allocation6], 128
    $region57: #{tpu_custom_call.1} parent=1 // pred_fallthru
      _
    // Predicated region
    $region58: #{tpu_custom_call.1} parent=1 // pred_check
      _
    $region59: #{tpu_custom_call.1} parent=1 // pred_check_branch
      %124 = sbr.rel (0) target = $region61
    $region60: #{tpu_custom_call.1} parent=1 // pred_region
      %125 = dma.done [#allocation9], 16
    $region61: #{tpu_custom_call.1} parent=1 // pred_fallthru
      _
    // Predicated region
    $region62: #{tpu_custom_call.1} parent=1 // pred_check
      _
    $region63: #{tpu_custom_call.1} parent=1 // pred_check_branch
      %127 = sbr.rel (0) target = $region65
    $region64: #{tpu_custom_call.1} parent=1 // pred_region
      %128 = dma.done [#allocation9], 256
    $region65: #{tpu_custom_call.1} parent=1 // pred_fallthru
      _
    // Predicated region
    $region66: #{tpu_custom_call.1} parent=1 // pred_check
      _
    $region67: #{tpu_custom_call.1} parent=1 // pred_check_branch
      %130 = sbr.rel (0) target = $region69
    $region68: #{tpu_custom_call.1} parent=1 // pred_region
      %131 = dma.done [#allocation12], 16
    $region69: #{tpu_custom_call.1} parent=1 // pred_fallthru
      _
    // Predicated region
    $region70: #{tpu_custom_call.1} parent=1 // pred_check
      _
    $region71: #{tpu_custom_call.1} parent=1 // pred_check_branch
      %133 = sbr.rel (0) target = $region73
    $region72: #{tpu_custom_call.1} parent=1 // pred_region
      %134 = dma.done [#allocation12], 256
    $region73: #{tpu_custom_call.1} parent=1 // pred_fallthru
      _
    // Predicated region
    $region74: #{tpu_custom_call.1} parent=1 // pred_check
      _
    $region75: #{tpu_custom_call.1} parent=1 // pred_check_branch
      %136 = sbr.rel (0) target = $region77
    $region76: #{tpu_custom_call.1} parent=1 // pred_region
      %137 = dma.done [#allocation15], 16
    $region77: #{tpu_custom_call.1} parent=1 // pred_fallthru
      _
    %v139 = vld [vmem:[#allocation2] sm:$0x1]
    %v140 = vld [vmem:[#allocation7] sm:$0xf]
    %v141 = vld [vmem:[#allocation7 + $0x4] sm:$0xf]
    %v142 = vld [vmem:[#allocation5] sm:$0x1]
    %v143 = vld [vmem:[%s3] sm:$0x3]
    %vm144 = vcmask 31744
    %v146 = vsel %vm144, %v142, 0
    %vm148 = vcmask 1041408
    %v150 = vsel %vm148, %v143, 0
    %152 = vmatprep.subr.bf16.mxu0 0
    %153 = vmatpush1.bf16.msra.mxu0 %v150
    %154 = vmatprep.subr.bf16.mxu0 0
    %155 = vmatpush1.bf16.msra.mxu0 0
    %156 = vmatprep.subr.bf16.mxu0 0
    %157 = vmatpush1.bf16.msra.mxu0 0
    %158 = vmatprep.subr.bf16.mxu0 0
    %159 = vmatpush1.bf16.msra.mxu0 0
    %160 = vmatprep.subr.bf16.mxu0 0
    %161 = vmatpush1.bf16.msra.mxu0 0
    %162 = vmatprep.subr.bf16.mxu0 0
    %163 = vmatpush1.bf16.msra.mxu0 0
    %164 = vmatprep.subr.bf16.mxu0 0
    %165 = vmatpush1.bf16.msra.mxu0 0
    %166 = vmatprep.subr.bf16.mxu0 0
    %167 = vmatpush1.bf16.msra.mxu0 0
    %168 = vmatprep.subr.bf16.mxu0 0
    %169 = vmatpush1.bf16.msra.mxu0 0
    %170 = vmatprep.subr.bf16.mxu0 0
    %171 = vmatpush1.bf16.msra.mxu0 0
    %172 = vmatprep.subr.bf16.mxu0 0
    %173 = vmatpush1.bf16.msra.mxu0 0
    %174 = vmatprep.subr.bf16.mxu0 0
    %175 = vmatpush1.bf16.msra.mxu0 0
    %176 = vmatprep.subr.bf16.mxu0 0
    %177 = vmatpush1.bf16.msra.mxu0 0
    %178 = vmatprep.subr.bf16.mxu0 0
    %179 = vmatpush1.bf16.msra.mxu0 0
    %180 = vmatprep.subr.bf16.mxu0 0
    %181 = vmatpush1.bf16.msra.mxu0 0
    %182 = vmatprep.subr.bf16.mxu0 0
    %183 = vmatpush1.bf16.msra.mxu0 0
    %184 = vmatprep.mubr.bf16.mxu0 0
    %185 = vmatmul.mubr.bf16.gmra.mrb[0].mxu0 %v146
    %v186 = vpop.f32.mrb[0].mxu0
    %v187 = vadd.f32 0.0, %v186
    %v188 = vpop.f32.mrb[0].mxu0
    %v189 = vpop.f32.mrb[0].mxu0
    %v190 = vpop.f32.mrb[0].mxu0
    %191 = vdwg.mxu0
    %v194 = vunpack.c.l.b16 %v140
    %v195 = vunpack.c.l.b16 %v141
    %v196 = vpack.c.b16 %v195, %v194
    %vm198 = vcmask 130048
    %v200 = vsel %vm198, %v139, 0
    %202 = vmatprep.subr.bf16.mxu0 0
    %203 = vmatpush1.bf16.msra.mxu0 %v196
    %204 = vmatprep.subr.bf16.mxu0 0
    %205 = vmatpush1.bf16.msra.mxu0 0
    %206 = vmatprep.subr.bf16.mxu0 0
    %207 = vmatpush1.bf16.msra.mxu0 0
    %208 = vmatprep.subr.bf16.mxu0 0
    %209 = vmatpush1.bf16.msra.mxu0 0
    %210 = vmatprep.subr.bf16.mxu0 0
    %211 = vmatpush1.bf16.msra.mxu0 0
    %212 = vmatprep.subr.bf16.mxu0 0
    %213 = vmatpush1.bf16.msra.mxu0 0
    %214 = vmatprep.subr.bf16.mxu0 0
    %215 = vmatpush1.bf16.msra.mxu0 0
    %216 = vmatprep.subr.bf16.mxu0 0
    %217 = vmatpush1.bf16.msra.mxu0 0
    %218 = vmatprep.subr.bf16.mxu0 0
    %219 = vmatpush1.bf16.msra.mxu0 0
    %220 = vmatprep.subr.bf16.mxu0 0
    %221 = vmatpush1.bf16.msra.mxu0 0
    %222 = vmatprep.subr.bf16.mxu0 0
    %223 = vmatpush1.bf16.msra.mxu0 0
    %224 = vmatprep.subr.bf16.mxu0 0
    %225 = vmatpush1.bf16.msra.mxu0 0
    %226 = vmatprep.subr.bf16.mxu0 0
    %227 = vmatpush1.bf16.msra.mxu0 0
    %228 = vmatprep.subr.bf16.mxu0 0
    %229 = vmatpush1.bf16.msra.mxu0 0
    %230 = vmatprep.subr.bf16.mxu0 0
    %231 = vmatpush1.bf16.msra.mxu0 0
    %232 = vmatprep.subr.bf16.mxu0 0
    %233 = vmatpush1.bf16.msra.mxu0 0
    %234 = vmatprep.mubr.bf16.mxu0 0
    %235 = vmatmul.mubr.bf16.gmra.mrb[0].mxu0 %v200
    %v236 = vpop.f32.mrb[0].mxu0
    %v237 = vadd.f32 %v187, %v236
    %v238 = vpop.f32.mrb[0].mxu0
    %v239 = vpop.f32.mrb[0].mxu0
    %v240 = vpop.f32.mrb[0].mxu0
    %241 = vdwg.mxu0
    %v242 = vld [vmem:[#allocation8] sm:$0x1]
    %v244 = vlaneseq
    %v245 = vshrl.u32 %v244, 7
    %v246 = vsub.s32 0, %v245
    %v247 = vrot.slane %v242, %v246
    %v249 = vadd.f32 %v237, %v247
    %v250 = vmax.f32 %v249, 0.0
    %v251 = vpack.c.bf16 %v250, %v250
    %v252 = vld [vmem:[#allocation10] sm:$0xf]
    %v253 = vld [vmem:[#allocation10 + $0x4] sm:$0xf]
    %v254 = vld [vmem:[#allocation10 + $0x8] sm:$0xf]
    %v255 = vld [vmem:[#allocation10 + $0xc] sm:$0xf]
    %v256 = vld [vmem:[#allocation11] sm:$0x1]
    %v258 = vlaneseq
    %v259 = vshrl.u32 %v258, 7
    %v260 = vsub.s32 0, %v259
    %v261 = vrot.slane %v256, %v260
    %v267 = vunpack.c.l.b16 %v252
    %v268 = vunpack.c.l.b16 %v253
    %v269 = vunpack.c.l.b16 %v254
    %v270 = vunpack.c.l.b16 %v255
    %v271 = vpack.c.b16 %v268, %v267
    %v272 = vpack.c.b16 %v270, %v269
    %vm275 = vcmask 261120
    %v277 = vsel %vm275, %v251, 0
    %279 = vmatprep.subr.bf16.mxu0 0
    %280 = vmatpush1.bf16.msra.mxu0 %v271
    %281 = vmatprep.subr.bf16.mxu0 0
    %282 = vmatpush1.bf16.msra.mxu0 %v272
    %283 = vmatprep.subr.bf16.mxu0 0
    %284 = vmatpush1.bf16.msra.mxu0 0
    %285 = vmatprep.subr.bf16.mxu0 0
    %286 = vmatpush1.bf16.msra.mxu0 0
    %287 = vmatprep.subr.bf16.mxu0 0
    %288 = vmatpush1.bf16.msra.mxu0 0
    %289 = vmatprep.subr.bf16.mxu0 0
    %290 = vmatpush1.bf16.msra.mxu0 0
    %291 = vmatprep.subr.bf16.mxu0 0
    %292 = vmatpush1.bf16.msra.mxu0 0
    %293 = vmatprep.subr.bf16.mxu0 0
    %294 = vmatpush1.bf16.msra.mxu0 0
    %295 = vmatprep.subr.bf16.mxu0 0
    %296 = vmatpush1.bf16.msra.mxu0 0
    %297 = vmatprep.subr.bf16.mxu0 0
    %298 = vmatpush1.bf16.msra.mxu0 0
    %299 = vmatprep.subr.bf16.mxu0 0
    %300 = vmatpush1.bf16.msra.mxu0 0
    %301 = vmatprep.subr.bf16.mxu0 0
    %302 = vmatpush1.bf16.msra.mxu0 0
    %303 = vmatprep.subr.bf16.mxu0 0
    %304 = vmatpush1.bf16.msra.mxu0 0
    %305 = vmatprep.subr.bf16.mxu0 0
    %306 = vmatpush1.bf16.msra.mxu0 0
    %307 = vmatprep.subr.bf16.mxu0 0
    %308 = vmatpush1.bf16.msra.mxu0 0
    %309 = vmatprep.subr.bf16.mxu0 0
    %310 = vmatpush1.bf16.msra.mxu0 0
    %311 = vmatprep.mubr.bf16.mxu0 0
    %312 = vmatmul.mubr.bf16.gmra.mrb[0].mxu0 %v277
    %v313 = vpop.f32.mrb[0].mxu0
    %v314 = vadd.f32 %v261, %v313
    %v315 = vpop.f32.mrb[0].mxu0
    %v316 = vpop.f32.mrb[0].mxu0
    %v317 = vpop.f32.mrb[0].mxu0
    %318 = vdwg.mxu0
    %v319 = vmax.f32 %v314, 0.0
    %v320 = vpack.c.bf16 %v319, %v319
    %v321 = vld [vmem:[#allocation13] sm:$0xf]
    %v322 = vld [vmem:[#allocation13 + $0x4] sm:$0xf]
    %v323 = vld [vmem:[#allocation13 + $0x8] sm:$0xf]
    %v324 = vld [vmem:[#allocation13 + $0xc] sm:$0xf]
    %v325 = vld [vmem:[#allocation14] sm:$0x1]
    %v327 = vlaneseq
    %v328 = vshrl.u32 %v327, 7
    %v329 = vsub.s32 0, %v328
    %v330 = vrot.slane %v325, %v329
    %v336 = vunpack.c.l.b16 %v321
    %v337 = vunpack.c.l.b16 %v322
    %v338 = vunpack.c.l.b16 %v323
    %v339 = vunpack.c.l.b16 %v324
    %v340 = vpack.c.b16 %v337, %v336
    %v341 = vpack.c.b16 %v339, %v338
    %v345 = vsel %vm275, %v320, 0
    %347 = vmatprep.subr.bf16.mxu0 0
    %348 = vmatpush1.bf16.msra.mxu0 %v340
    %349 = vmatprep.subr.bf16.mxu0 0
    %350 = vmatpush1.bf16.msra.mxu0 %v341
    %351 = vmatprep.subr.bf16.mxu0 0
    %352 = vmatpush1.bf16.msra.mxu0 0
    %353 = vmatprep.subr.bf16.mxu0 0
    %354 = vmatpush1.bf16.msra.mxu0 0
    %355 = vmatprep.subr.bf16.mxu0 0
    %356 = vmatpush1.bf16.msra.mxu0 0
    %357 = vmatprep.subr.bf16.mxu0 0
    %358 = vmatpush1.bf16.msra.mxu0 0
    %359 = vmatprep.subr.bf16.mxu0 0
    %360 = vmatpush1.bf16.msra.mxu0 0
    %361 = vmatprep.subr.bf16.mxu0 0
    %362 = vmatpush1.bf16.msra.mxu0 0
    %363 = vmatprep.subr.bf16.mxu0 0
    %364 = vmatpush1.bf16.msra.mxu0 0
    %365 = vmatprep.subr.bf16.mxu0 0
    %366 = vmatpush1.bf16.msra.mxu0 0
    %367 = vmatprep.subr.bf16.mxu0 0
    %368 = vmatpush1.bf16.msra.mxu0 0
    %369 = vmatprep.subr.bf16.mxu0 0
    %370 = vmatpush1.bf16.msra.mxu0 0
    %371 = vmatprep.subr.bf16.mxu0 0
    %372 = vmatpush1.bf16.msra.mxu0 0
    %373 = vmatprep.subr.bf16.mxu0 0
    %374 = vmatpush1.bf16.msra.mxu0 0
    %375 = vmatprep.subr.bf16.mxu0 0
    %376 = vmatpush1.bf16.msra.mxu0 0
    %377 = vmatprep.subr.bf16.mxu0 0
    %378 = vmatpush1.bf16.msra.mxu0 0
    %379 = vmatprep.mubr.bf16.mxu0 0
    %380 = vmatmul.mubr.bf16.gmra.mrb[0].mxu0 %v345
    %v381 = vpop.f32.mrb[0].mxu0
    %v382 = vadd.f32 %v330, %v381
    %v383 = vpop.f32.mrb[0].mxu0
    %v384 = vpop.f32.mrb[0].mxu0
    %v385 = vpop.f32.mrb[0].mxu0
    %386 = vdwg.mxu0
    %v387 = vmax.f32 %v382, 0.0
    %v388 = vpack.c.bf16 %v387, %v387
    %v389 = vld [vmem:[%s9] sm:$0xf]
    %v390 = vld [vmem:[%s9 + $0x4] sm:$0xf]
    %v391 = vld [vmem:[%s9 + $0x8] sm:$0xf]
    %v392 = vld [vmem:[%s9 + $0xc] sm:$0xf]
    %v393 = vld [vmem:[%s9 + $0x10] sm:$0xf]
    %v394 = vld [vmem:[%s9 + $0x14] sm:$0xf]
    %v395 = vld [vmem:[%s9 + $0x18] sm:$0xf]
    %v396 = vld [vmem:[%s9 + $0x1c] sm:$0xf]
    %v397 = vld [vmem:[%s10] sm:$0x1]
    %v399 = vlaneseq
    %v400 = vshrl.u32 %v399, 7
    %v401 = vsub.s32 0, %v400
    %v402 = vrot.slane %v397, %v401
    %v412 = vunpack.c.l.b16 %v389
    %v413 = vunpack.c.l.b16 %v390
    %v414 = vunpack.c.l.b16 %v391
    %v415 = vunpack.c.l.b16 %v392
    %v416 = vunpack.c.l.b16 %v393
    %v417 = vunpack.c.l.b16 %v394
    %v418 = vunpack.c.l.b16 %v395
    %v419 = vunpack.c.l.b16 %v396
    %v420 = vpack.c.b16 %v413, %v412
    %v421 = vpack.c.b16 %v415, %v414
    %v422 = vpack.c.b16 %v417, %v416
    %v423 = vpack.c.b16 %v419, %v418
    %vm428 = vcmask 523264
    %v430 = vsel %vm428, %v388, 0
    %432 = vmatprep.subr.bf16.mxu0 0
    %433 = vmatpush1.bf16.msra.mxu0 %v420
    %434 = vmatprep.subr.bf16.mxu0 0
    %435 = vmatpush1.bf16.msra.mxu0 %v421
    %436 = vmatprep.subr.bf16.mxu0 0
    %437 = vmatpush1.bf16.msra.mxu0 %v422
    %438 = vmatprep.subr.bf16.mxu0 0
    %439 = vmatpush1.bf16.msra.mxu0 %v423
    %440 = vmatprep.subr.bf16.mxu0 0
    %441 = vmatpush1.bf16.msra.mxu0 0
    %442 = vmatprep.subr.bf16.mxu0 0
    %443 = vmatpush1.bf16.msra.mxu0 0
    %444 = vmatprep.subr.bf16.mxu0 0
    %445 = vmatpush1.bf16.msra.mxu0 0
    %446 = vmatprep.subr.bf16.mxu0 0
    %447 = vmatpush1.bf16.msra.mxu0 0
    %448 = vmatprep.subr.bf16.mxu0 0
    %449 = vmatpush1.bf16.msra.mxu0 0
    %450 = vmatprep.subr.bf16.mxu0 0
    %451 = vmatpush1.bf16.msra.mxu0 0
    %452 = vmatprep.subr.bf16.mxu0 0
    %453 = vmatpush1.bf16.msra.mxu0 0
    %454 = vmatprep.subr.bf16.mxu0 0
    %455 = vmatpush1.bf16.msra.mxu0 0
    %456 = vmatprep.subr.bf16.mxu0 0
    %457 = vmatpush1.bf16.msra.mxu0 0
    %458 = vmatprep.subr.bf16.mxu0 0
    %459 = vmatpush1.bf16.msra.mxu0 0
    %460 = vmatprep.subr.bf16.mxu0 0
    %461 = vmatpush1.bf16.msra.mxu0 0
    %462 = vmatprep.subr.bf16.mxu0 0
    %463 = vmatpush1.bf16.msra.mxu0 0
    %464 = vmatprep.mubr.bf16.mxu0 0
    %465 = vmatmul.mubr.bf16.gmra.mrb[0].mxu0 %v430
    %v466 = vpop.f32.mrb[0].mxu0
    %v467 = vadd.f32 %v402, %v466
    %v468 = vpop.f32.mrb[0].mxu0
    %v469 = vpop.f32.mrb[0].mxu0
    %v470 = vpop.f32.mrb[0].mxu0
    %471 = vdwg.mxu0
    %472 = vst [vmem:[#allocation16] sm:$0x3] %v467
    // Predicated region
    $region78: #{tpu_custom_call.1} parent=1 // pred_check
      _
    $region79: #{tpu_custom_call.1} parent=1 // pred_check_branch
      %474 = sbr.rel (0) target = $region81
    $region80: #{tpu_custom_call.1} parent=1 // pred_region
      %s476 = ssub.s32 32, 32
      %477 = vsyncadd [#allocation4], %s476
      %s479 = sshll.u32 [#allocation16], 4
      %s480 = int_to_ptr.vmem [resolvable:$true] %s479
      %482 = dma.vmem_to_hbm [thread:$0]  %s480, 32, %s11, [#allocation4]
    $region81: #{tpu_custom_call.1} parent=1 // pred_fallthru
      _
    // Predicated region
    $region82: #{tpu_custom_call.1} parent=1 // pred_check
      _
    $region83: #{tpu_custom_call.1} parent=1 // pred_check_branch
      %484 = sbr.rel (0) target = $region85
    $region84: #{tpu_custom_call.1} parent=1 // pred_region
      %485 = dma.done [#allocation4], 32
    $region85: #{tpu_custom_call.1} parent=1 // pred_fallthru
      _
    %486 = vsyncpa [#allocation3], 1
    %487 = vsyncpa [#allocation6], 1
    %488 = vsyncpa [#allocation9], 1
    %489 = vsyncpa [#allocation12], 1
    %490 = vsyncpa [#allocation15], 1
    %491 = vsyncpa [#allocation4], 1

</llo_original>
